<compile_context>
chip_gen: v6e
topology: v6e:2x2x1
jax: 0.10.0
libtpu: 0.0.40
codegen_flags: <defaults>
</compile_context>

<pallas_src>
import math

import jax
import jax.numpy as jnp
from jax.experimental import pallas as pl
from jax.experimental.pallas import tpu as pltpu


# ----------------------------------------------------------------------------
# Kernel body (intentionally trivial: kernel is HBM-bound on every generation;
# VALU micro-optimizations cannot move wall time).
# ----------------------------------------------------------------------------
def _denormalize_kernel(x_ref, mu_ref, std_ref, o_ref):
    x = x_ref[...].astype(o_ref.dtype)
    o_ref[...] = (x + mu_ref[...]) * std_ref[...]


# ----------------------------------------------------------------------------
# Helpers
# ----------------------------------------------------------------------------
def _round_up(a, b):
    return ((a + b - 1) // b) * b


def _vmem_capacity_bytes():
    """Per-core VMEM capacity; conservative (v7x = 64 MiB) if unqueryable."""
    try:
        info = pltpu.get_tpu_info()
        cap = getattr(info, "vmem_capacity_bytes", None)
        if cap:
            return int(cap)
    except Exception:
        pass
    return 64 << 20


def _fold_factor(feat):
    """Rows to fold into the lane axis so the folded width is a 128 multiple."""
    if feat <= 0 or feat % 128 == 0:
        return 1
    k = 128 // math.gcd(feat, 128)
    return k if k <= 32 else 1


def _denorm_ref(x, mu, std, out_dtype):
    """Plain-XLA reference path (fast path / tiny remainders)."""
    return (x.astype(out_dtype) + mu.astype(out_dtype)) * std.astype(out_dtype)


def _choose_tiles(num_rows, feat, sub, itemsize, target_bytes, min_row_steps=8):
    """Pick (row_tile, col_tile) for a [num_rows, feat] slab.

    - col_tile is the full feature width unless even a minimal-row slab busts
      the byte budget; then a 128-multiple column tile is used (Pallas masks
      any ragged last column block, so feat need not divide evenly).
    - row_tile fills the budget (multiple of the sublane quantum) but is capped
      so the row grid has >= min_row_steps blocks: that keeps the software
      pipeline busy and feeds both v7x TensorCores on the parallel row axis.
    """
    if feat > 128 and sub * feat * itemsize > target_bytes:
        col_tile = max(128, ((target_bytes // (sub * itemsize)) // 128) * 128)
    else:
        col_tile = feat

    row_budget = max(sub, ((target_bytes // (col_tile * itemsize)) // sub) * sub)
    rows_for_min_steps = max(sub, _round_up(pl.cdiv(num_rows, min_row_steps), sub))
    row_tile = min(row_budget, rows_for_min_steps)
    if num_rows < row_tile:
        row_tile = num_rows  # full extent is always a legal block dim
    return row_tile, col_tile


def _pallas_denorm(x2, mu1, std1, out_dtype, target_block_bytes, vmem_limit):
    """Run the Pallas kernel on a 2-D slab x2: [R, D]; mu1/std1: [D] (out_dtype)."""
    R, D = x2.shape
    mu2 = mu1.reshape(1, D)
    std2 = std1.reshape(1, D)

    in_item = x2.dtype.itemsize
    out_item = jnp.dtype(out_dtype).itemsize
    sub = max(8, 32 // min(in_item, out_item))      # strictest sublane quantum
    budget_item = max(in_item, out_item)            # budget with the fatter tile

    row_tile, col_tile = _choose_tiles(R, D, sub, budget_item, target_block_bytes)

    if col_tile >= D:
        # Common case: whole feature width in one tile -> 1-D grid, mu/std keep
        # the same block index every step (their DMA is issued once).
        grid = (pl.cdiv(R, row_tile),)
        x_spec = pl.BlockSpec((row_tile, D), lambda i: (i, 0))
        p_spec = pl.BlockSpec((1, D), lambda i: (0, 0))
        o_spec = pl.BlockSpec((row_tile, D), lambda i: (i, 0))
        semantics = ("parallel",)
    else:
        grid = (pl.cdiv(R, row_tile), pl.cdiv(D, col_tile))
        x_spec = pl.BlockSpec((row_tile, col_tile), lambda i, j: (i, j))
        p_spec = pl.BlockSpec((1, col_tile), lambda i, j: (0, j))
        o_spec = pl.BlockSpec((row_tile, col_tile), lambda i, j: (i, j))
        semantics = ("parallel", "parallel")

    return pl.pallas_call(
        _denormalize_kernel,
        out_shape=jax.ShapeDtypeStruct((R, D), out_dtype),
        grid_spec=pltpu.PrefetchScalarGridSpec(
            num_scalar_prefetch=0,
            grid=grid,
            in_specs=[x_spec, p_spec, p_spec],
            out_specs=o_spec,
        ),
        compiler_params=pltpu.CompilerParams(
            dimension_semantics=semantics,
            vmem_limit_bytes=vmem_limit,
        ),
    )(x2, mu2, std2)


# ----------------------------------------------------------------------------
# Public wrapper: Denormalizer.forward
# ----------------------------------------------------------------------------
def denormalize(x, mu, std, *, target_block_bytes=None, min_pallas_bytes=1 << 20):
    """Pallas implementation of Denormalizer.forward: (x + mu) * std.

    x:   [..., D]
    mu:  [D]
    std: [D]
    """
    assert x.shape[-1] == mu.shape[-1] == std.shape[-1]
    orig_shape = x.shape
    D = orig_shape[-1]

    out_dtype = jnp.result_type(x.dtype, mu.dtype, std.dtype)  # torch promotion

    x2 = x.reshape(-1, D)
    R = x2.shape[0]
    mu1 = mu.reshape(-1).astype(out_dtype)
    std1 = std.reshape(-1).astype(out_dtype)

    out_item = jnp.dtype(out_dtype).itemsize
    total_bytes = R * D * max(x2.dtype.itemsize, out_item)

    # Small-input / degenerate fast path: launch cost dominates; let XLA fuse.
    if R == 0 or D == 0 or total_bytes < min_pallas_bytes:
        return _denorm_ref(x, mu, std, out_dtype)

    # Generation-aware budgets: v7x (64 MiB VMEM) -> ~48 MiB limit / ~8 MiB
    # tiles; v5e/v6e (128 MiB) -> ~96 MiB limit / ~16 MiB tiles.  Footprint is
    # ~2x in-tile + 2x out-tile (double-buffered) <= 2/3 of the limit.
    cap = _vmem_capacity_bytes()
    vmem_limit = min((cap * 3) // 4, 96 << 20)
    if target_block_bytes is None:
        target_block_bytes = max(1 << 20, vmem_limit // 6)
    else:
        target_block_bytes = max(64 * 1024, min(target_block_bytes, vmem_limit // 6))

    # Lane folding: fold k rows into the lane axis so the folded feature width
    # is a multiple of 128 (lane-dense DMAs and unmasked vst on all chips).
    k = _fold_factor(D)
    if k > 1 and R >= k:
        r_main = (R // k) * k
        x_main = x2[:r_main].reshape(r_main // k, k * D)
        mu_k = jnp.tile(mu1, k)
        std_k = jnp.tile(std1, k)
        out_main = _pallas_denorm(
            x_main, mu_k, std_k, out_dtype, target_block_bytes, vmem_limit
        ).reshape(r_main, D)
        if r_main < R:
            # Rare ragged remainder (< k <= 32 rows): plain XLA, then stitch.
            # The concatenate costs one extra pass over the main output; it only
            # triggers when R % k != 0 and is still cheaper than abandoning
            # lane-dense stores for the whole tensor.
            out_rem = _denorm_ref(x2[r_main:], mu1, std1, out_dtype)
            out2 = jnp.concatenate([out_main, out_rem], axis=0)
        else:
            out2 = out_main
    else:
        out2 = _pallas_denorm(x2, mu1, std1, out_dtype, target_block_bytes, vmem_limit)

    return out2.reshape(orig_shape)


# ----------------------------------------------------------------------------
# Self-test
# ----------------------------------------------------------------------------
if __name__ == "__main__":
    key = jax.random.PRNGKey(0)
    ks = jax.random.split(key, 12)

    def check(x, mu, std, **kw):
        out = jax.block_until_ready(denormalize(x, mu, std, **kw))
        want_dtype = jnp.result_type(x.dtype, mu.dtype, std.dtype)
        ref = (x.astype(want_dtype) + mu.astype(want_dtype)) * std.astype(want_dtype)
        assert out.shape == x.shape, (out.shape, x.shape)
        assert out.dtype == want_dtype, (out.dtype, want_dtype)
        assert jnp.allclose(out, ref, atol=1e-5, rtol=1e-5), "mismatch vs reference"

    # Case 1: module-shaped small input (batch=2, seq=8, hidden=32).
    #   D=32 -> lane folding k=4, R=16 divisible by k.  Force the Pallas path.
    x = jax.random.normal(ks[0], (2, 8, 32), dtype=jnp.float32)
    mu = jax.random.normal(ks[1], (32,), dtype=jnp.float32)
    std = jax.random.uniform(ks[2], (32,), dtype=jnp.float32) + 0.5
    check(x, mu, std, min_pallas_bytes=0)

    # Case 2: D=48 -> fold k=8; R=21 not divisible by k -> folded main slab plus
    #   tiny plain-XLA remainder.
    x = jax.random.normal(ks[3], (3, 7, 48), dtype=jnp.float32)
    mu = jax.random.normal(ks[4], (48,), dtype=jnp.float32)
    std = jax.random.uniform(ks[5], (48,), dtype=jnp.float32) + 0.5
    check(x, mu, std, min_pallas_bytes=0)

    # Case 3: larger slab with a small block budget -> multi-step pipelined row
    #   grid with a ragged (masked) last row block, no host-side padding.
    x = jax.random.normal(ks[6], (1030, 256), dtype=jnp.float32)
    mu = jax.random.normal(ks[7], (256,), dtype=jnp.float32)
    std = jax.random.uniform(ks[8], (256,), dtype=jnp.float32) + 0.5
    check(x, mu, std, min_pallas_bytes=0, target_block_bytes=64 * 1024)

    # Case 4: bf16 activations with f32 parameters -> f32 output (torch-style
    #   type promotion), cast of x happens inside the kernel.
    x = jax.random.normal(ks[9], (4, 8, 128), dtype=jnp.bfloat16)
    mu = jax.random.normal(ks[10], (128,), dtype=jnp.float32)
    std = jax.random.uniform(ks[11], (128,), dtype=jnp.float32) + 0.5
    check(x, mu, std, min_pallas_bytes=0)

    print("KERNEL_OK")
</pallas_src>

<mosaic_0001>
module attributes {stable_mosaic.version = 11 : i64} {
  func.func @_denormalize_kernel(%arg0: i32, %arg1: memref<4x128xf32, #tpu.memory_space<vmem>>, %arg2: memref<1x128xf32, #tpu.memory_space<vmem>>, %arg3: memref<1x128xf32, #tpu.memory_space<vmem>>, %arg4: memref<4x128xf32, #tpu.memory_space<vmem>>) attributes {dimension_semantics = [#tpu.dimension_semantics<parallel>], iteration_bounds = array<i64: 1>, scalar_prefetch = 0 : i64, scratch_operands = 0 : i64, tpu.core_type = #tpu.core_type<tc>, window_params = [{transform_indices = @transform_0, window_bounds = array<i64: 4, 128>}, {pipeline_mode = #tpu.pipeline_mode<synchronous>, transform_indices = @transform_1, window_bounds = array<i64: 1, 128>}, {pipeline_mode = #tpu.pipeline_mode<synchronous>, transform_indices = @transform_2, window_bounds = array<i64: 1, 128>}, {transform_indices = @transform_3, window_bounds = array<i64: 4, 128>}]} {
    %c0 = arith.constant 0 : index
    %c0_0 = arith.constant 0 : index
    %0 = vector.load %arg1[%c0, %c0_0] : memref<4x128xf32, #tpu.memory_space<vmem>>, vector<4x128xf32>
    %c0_1 = arith.constant 0 : index
    %c0_2 = arith.constant 0 : index
    %1 = vector.load %arg2[%c0_1, %c0_2] : memref<1x128xf32, #tpu.memory_space<vmem>>, vector<1x128xf32>
    %2 = vector.broadcast %1 : vector<1x128xf32> to vector<4x128xf32>
    %3 = arith.addf %0, %2 : vector<4x128xf32>
    %c0_3 = arith.constant 0 : index
    %c0_4 = arith.constant 0 : index
    %4 = vector.load %arg3[%c0_3, %c0_4] : memref<1x128xf32, #tpu.memory_space<vmem>>, vector<1x128xf32>
    %5 = vector.broadcast %4 : vector<1x128xf32> to vector<4x128xf32>
    %6 = arith.mulf %3, %5 : vector<4x128xf32>
    %c0_5 = arith.constant 0 : index
    %c0_6 = arith.constant 0 : index
    %7 = vector.load %arg4[%c0_5, %c0_6] : memref<4x128xf32, #tpu.memory_space<vmem>>, vector<4x128xf32>
    tpu.vector_store %arg4[%c0_5, %c0_6], %6 {strides = array<i32>} : memref<4x128xf32, #tpu.memory_space<vmem>>, vector<4x128xf32>,
    return
  }
  func.func @transform_0(%arg0: i32) -> (i32, i32) {
    %c0_i32 = arith.constant 0 : i32
    %c0_i32_0 = arith.constant 0 : i32
    return %arg0, %c0_i32 : i32, i32
  }
  func.func @transform_1(%arg0: i32) -> (i32, i32) {
    %c0_i32 = arith.constant 0 : i32
    %c0_i32_0 = arith.constant 0 : i32
    %c0_i32_1 = arith.constant 0 : i32
    return %c0_i32, %c0_i32_0 : i32, i32
  }
  func.func @transform_2(%arg0: i32) -> (i32, i32) {
    %c0_i32 = arith.constant 0 : i32
    %c0_i32_0 = arith.constant 0 : i32
    %c0_i32_1 = arith.constant 0 : i32
    return %c0_i32, %c0_i32_0 : i32, i32
  }
  func.func @transform_3(%arg0: i32) -> (i32, i32) {
    %c0_i32 = arith.constant 0 : i32
    %c0_i32_0 = arith.constant 0 : i32
    return %arg0, %c0_i32 : i32, i32
  }
}

</mosaic_0001>

<llo_original>
// kernel: tpu_custom_call.1
$region0: #{tpu_custom_call.1}
  #allocation0 [shape = 'u32[]', space=smem, size = 0x4, offset = 0x4, fixed_abs, tag = 'smem constant byte address 0x4 - core index']
  #allocation1 [shape = 'u32[144,128]{1,0:T(1,128)}', space=vmem, size = 0x12000, scoped, tag = 'internal scratch']
  %s0 = inlined_call_operand.hbm [shape: f32[4,128], index: 0, kind: input, shape index: {}]
  %s1 = inlined_call_operand.vmem [shape: f32[1,128], index: 1, kind: input, shape index: {}]
  %s2 = inlined_call_operand.vmem [shape: f32[1,128], index: 2, kind: input, shape index: {}]
  %s3 = inlined_call_operand.hbm [shape: f32[4,128], index: 3, kind: output, shape index: {}]
  %s4 = sld [smem:[#allocation0]]
  $region26: #{tpu_custom_call.1} parent=0
    _
  %s6 = ssub.s32 1, %s4
  %s7 = scalar_select 0, %s6, %s4
  $region1: #{tpu_custom_call.1} parent=0
    #allocation2 [shape = 'u8[2048]{0}', space=vmem, size = 0x800, scoped, tag = 'input window, operand 0, single buffered']
    #allocation3 [shape = 's32[1]{0}', space=sflag, size = 0x4, scoped, tag = 'scoped memory for tpu_custom_call.1']
    #allocation4 [shape = 's32[1]{0}', space=sflag, size = 0x4, scoped, tag = 'scoped memory for tpu_custom_call.1']
    #allocation5 [shape = 'u8[2048]{0}', space=vmem, size = 0x800, scoped, tag = 'output window, operand 0, single buffered']
    %8 = vsyncpa [#allocation3], 0
    %9 = vsyncpa [#allocation4], 0
    // Predicated region
    $region2: #{tpu_custom_call.1} parent=1 // pred_check
      _
    $region3: #{tpu_custom_call.1} parent=1 // pred_check_branch
      %11 = sbr.rel (0) target = $region5
    $region4: #{tpu_custom_call.1} parent=1 // pred_region
      %s13 = ssub.s32 64, 64
      %14 = vsyncadd [#allocation3], %s13
      %s16 = sshll.u32 [#allocation2], 4
      %s17 = int_to_ptr.vmem [resolvable:$true] %s16
      %19 = dma.hbm_to_vmem [thread:$0]  %s0, 64, %s17, [#allocation3]
    $region5: #{tpu_custom_call.1} parent=1 // pred_fallthru
      _
    // Predicated region
    $region6: #{tpu_custom_call.1} parent=1 // pred_check
      _
    $region7: #{tpu_custom_call.1} parent=1 // pred_check_branch
      %21 = sbr.rel (0) target = $region9
    $region8: #{tpu_custom_call.1} parent=1 // pred_region
      _
    $region9: #{tpu_custom_call.1} parent=1 // pred_fallthru
      _
    // Predicated region
    $region10: #{tpu_custom_call.1} parent=1 // pred_check
      _
    $region11: #{tpu_custom_call.1} parent=1 // pred_check_branch
      %23 = sbr.rel (0) target = $region13
    $region12: #{tpu_custom_call.1} parent=1 // pred_region
      _
    $region13: #{tpu_custom_call.1} parent=1 // pred_fallthru
      _
    // Predicated region
    $region14: #{tpu_custom_call.1} parent=1 // pred_check
      _
    $region15: #{tpu_custom_call.1} parent=1 // pred_check_branch
      %25 = sbr.rel (0) target = $region17
    $region16: #{tpu_custom_call.1} parent=1 // pred_region
      %26 = dma.done [#allocation3], 64
    $region17: #{tpu_custom_call.1} parent=1 // pred_fallthru
      _
    %v27 = vld [vmem:[#allocation2] sm:$0xf]
    %v28 = vld [vmem:[%s1] sm:$0x1]
    %v30 = vlaneseq
    %v31 = vshrl.u32 %v30, 7
    %v32 = vsub.s32 0, %v31
    %v33 = vrot.slane %v28, %v32
    %v35 = vadd.f32 %v27, %v33
    %v36 = vld [vmem:[%s2] sm:$0x1]
    %v38 = vlaneseq
    %v39 = vshrl.u32 %v38, 7
    %v40 = vsub.s32 0, %v39
    %v41 = vrot.slane %v36, %v40
    %v43 = vmul.f32 %v35, %v41
    %44 = vst [vmem:[#allocation5] sm:$0xf] %v43
    // Predicated region
    $region18: #{tpu_custom_call.1} parent=1 // pred_check
      _
    $region19: #{tpu_custom_call.1} parent=1 // pred_check_branch
      %46 = sbr.rel (0) target = $region21
    $region20: #{tpu_custom_call.1} parent=1 // pred_region
      %s48 = ssub.s32 64, 64
      %49 = vsyncadd [#allocation4], %s48
      %s51 = sshll.u32 [#allocation5], 4
      %s52 = int_to_ptr.vmem [resolvable:$true] %s51
      %54 = dma.vmem_to_hbm [thread:$0]  %s52, 64, %s3, [#allocation4]
    $region21: #{tpu_custom_call.1} parent=1 // pred_fallthru
      _
    // Predicated region
    $region22: #{tpu_custom_call.1} parent=1 // pred_check
      _
    $region23: #{tpu_custom_call.1} parent=1 // pred_check_branch
      %56 = sbr.rel (0) target = $region25
    $region24: #{tpu_custom_call.1} parent=1 // pred_region
      %57 = dma.done [#allocation4], 64
    $region25: #{tpu_custom_call.1} parent=1 // pred_fallthru
      _
    %58 = vsyncpa [#allocation3], 1
    %59 = vsyncpa [#allocation4], 1

</llo_original>
